<compile_context>
chip_gen: v5e
topology: v5e:2x2
jax: 0.10.0
libtpu: 0.0.40
codegen_flags: <defaults>
</compile_context>

<pallas_src>
import jax
import jax.numpy as jnp
from jax.experimental import pallas as pl
from jax.experimental.pallas import tpu as pltpu

# ---------------- hyperparameters (small, consistent with the module) --------
S = 8          # sequence length
B = 2          # batch size
D = 64         # d_model
H = 4          # num_heads
DH = D // H    # head dim
FF = 128       # dim_feedforward (PyTorch default is 2048; scaled down)
C = 16         # num_classes
C_PAD = 128    # classifier output padded to a full lane width
EPS = 1e-5     # layer_norm_eps (PyTorch default)
P_W = 3 * D    # packed small-parameter slab width (widest row = in-proj bias)
_SCALE = 1.0 / (DH ** 0.5)

# TODO(synk): dropout layers of TransformerEncoderLayer are identity in eval
# mode and are omitted (inference semantics only).


def _layer_norm(x, gamma, beta):
    mu = jnp.mean(x, axis=-1, keepdims=True)
    xc = x - mu
    var = jnp.mean(xc * xc, axis=-1, keepdims=True)
    return xc * jax.lax.rsqrt(var + EPS) * gamma + beta   # rsqrt -> EUP slot


# ---------------- fused Pallas kernel -----------------------------------------
def vit_kernel(x_ref, w_in_ref, wo_ref, w1_ref, w2_ref, wc_ref, pp_ref, out_ref):
    # Only batch element 0 feeds the output (per-batch attention + row-wise
    # LN/FF): slice it out and drop all batch-1 work.
    x0 = x_ref[...][:, 0, :]                                        # (S, D)

    # Unpack the single small-parameter slab with static slices (1 DMA total).
    pp = pp_ref[...]                                                # (11, 3D)
    b_in = pp[0:1, :]                                               # (1, 3D)
    bo, g1, be1 = pp[1:2, :D], pp[2:3, :D], pp[3:4, :D]
    b1 = pp[4:5, :FF]
    b2, g2, be2 = pp[5:6, :D], pp[6:7, :D], pp[7:8, :D]
    gc, bec = pp[8:9, :D], pp[9:10, :D]
    bc = pp[10:11, :C_PAD]

    # ---- self attention ------------------------------------------------------
    # Fused in-projection: one lane-dense matmul produces Q|K|V.
    qkv = jnp.dot(x0, w_in_ref[...],
                  preferred_element_type=jnp.float32) + b_in        # (S, 3D)

    # Head split via static lane slices, then one head-batched contraction.
    q = jnp.stack([qkv[:, h * DH:(h + 1) * DH] for h in range(H)], axis=0)
    k = jnp.stack([qkv[:, D + h * DH:D + (h + 1) * DH] for h in range(H)], axis=0)
    v = jnp.stack([qkv[:, 2 * D + h * DH:2 * D + (h + 1) * DH] for h in range(H)],
                  axis=0)                                           # (H, S, DH)

    s = jnp.einsum('hqd,hkd->hqk', q, k,
                   preferred_element_type=jnp.float32) * _SCALE     # (H, S, S)
    s = s - jnp.max(s, axis=-1, keepdims=True)
    p = jnp.exp(s)
    p = p * pl.reciprocal(jnp.sum(p, axis=-1, keepdims=True), approx=True)
    o = jnp.einsum('hqk,hkd->hqd', p, v,
                   preferred_element_type=jnp.float32)              # (H, S, DH)

    # Concatenate heads along lanes and apply ONE (D, D) output projection.
    o_sd = jnp.concatenate([o[h] for h in range(H)], axis=1)        # (S, D)
    attn = jnp.dot(o_sd, wo_ref[...],
                   preferred_element_type=jnp.float32) + bo         # (S, D)

    # ---- residual + LayerNorm1 ----------------------------------------------
    x1 = _layer_norm(x0 + attn, g1, be1)

    # ---- feed-forward --------------------------------------------------------
    h1 = jnp.dot(x1, w1_ref[...], preferred_element_type=jnp.float32) + b1
    h1 = jnp.maximum(h1, 0.0)                                       # ReLU
    h2 = jnp.dot(h1, w2_ref[...], preferred_element_type=jnp.float32) + b2

    # ---- residual + LayerNorm2 ----------------------------------------------
    x2 = _layer_norm(x1 + h2, g2, be2)

    # ---- classifier on x[:, 0] (= all S rows of the batch-0 slab) ------------
    yn = _layer_norm(x2, gc, bec)
    out_ref[...] = jnp.dot(yn, wc_ref[...],
                           preferred_element_type=jnp.float32) + bc  # (S, C_PAD)


# ---------------- wrapper ------------------------------------------------------
@jax.jit
def vit_forward(x_sbd, packed):
    """x_sbd: (S, B, D) float32 (PyTorch batch_first=False layout) -> (S, C)."""
    w_in, wo, w1, w2, wc_pad, pp = packed
    vmem = pl.BlockSpec(memory_space=pltpu.MemorySpace.VMEM)
    args = (x_sbd, w_in, wo, w1, w2, wc_pad, pp)
    out = pl.pallas_call(
        vit_kernel,
        out_shape=jax.ShapeDtypeStruct((S, C_PAD), jnp.float32),
        in_specs=[vmem] * len(args),
        out_specs=vmem,
    )(*args)
    return out[:, :C]


# ---------------- parameter init / packing ------------------------------------
def init_params(key):
    ks = jax.random.split(key, 12)
    n = lambda k, shape, scale=0.05: (scale * jax.random.normal(k, shape)).astype(jnp.float32)
    return {
        # attention (fused in-proj: columns ordered q_h0..q_h3 | k_h0.. | v_h0..)
        "w_in": n(ks[0], (D, 3 * D)), "b_in": n(ks[1], (3 * D,)),
        "wo": n(ks[2], (D, D)), "bo": n(ks[3], (D,)),
        # layernorm 1 / 2
        "g1": jnp.ones((D,), jnp.float32), "be1": jnp.zeros((D,), jnp.float32),
        "g2": jnp.ones((D,), jnp.float32), "be2": jnp.zeros((D,), jnp.float32),
        # feed-forward
        "w1": n(ks[4], (D, FF)), "b1": n(ks[5], (FF,)),
        "w2": n(ks[6], (FF, D)), "b2": n(ks[7], (D,)),
        # classifier: LayerNorm + Linear
        "gc": jnp.ones((D,), jnp.float32), "bec": jnp.zeros((D,), jnp.float32),
        "wc": n(ks[8], (D, C)), "bc": n(ks[9], (C,)),
    }


def pack_params(p):
    """Pack the 15 small vectors into ONE (11, 3D) slab; pad classifier weight
    to 128 output lanes.  Done once at init time (outside the kernel)."""
    def row(v):
        r = jnp.zeros((P_W,), jnp.float32)
        return r.at[: v.shape[0]].set(v.astype(jnp.float32))

    pp = jnp.stack(
        [row(p["b_in"]), row(p["bo"]), row(p["g1"]), row(p["be1"]),
         row(p["b1"]), row(p["b2"]), row(p["g2"]), row(p["be2"]),
         row(p["gc"]), row(p["bec"]), row(p["bc"])],
        axis=0)                                                     # (11, 3D)
    wc_pad = jnp.zeros((D, C_PAD), jnp.float32).at[:, :C].set(p["wc"])
    return (p["w_in"], p["wo"], p["w1"], p["w2"], wc_pad, pp)


if __name__ == "__main__":
    key = jax.random.PRNGKey(0)
    k_x, k_p = jax.random.split(key)
    x = jax.random.normal(k_x, (S, B, D), dtype=jnp.float32)   # (seq, batch, d_model)
    packed = pack_params(init_params(k_p))

    out = jax.block_until_ready(vit_forward(x, packed))

    assert out.shape == (S, C), out.shape
    assert bool(jnp.all(jnp.isfinite(out)))
    print("KERNEL_OK")
</pallas_src>

<mosaic_0001>
module attributes {stable_mosaic.version = 11 : i64} {
  func.func @vit_kernel(%arg0: memref<8x2x64xf32, #tpu.memory_space<vmem>>, %arg1: memref<64x192xf32, #tpu.memory_space<vmem>>, %arg2: memref<64x64xf32, #tpu.memory_space<vmem>>, %arg3: memref<64x128xf32, #tpu.memory_space<vmem>>, %arg4: memref<128x64xf32, #tpu.memory_space<vmem>>, %arg5: memref<64x128xf32, #tpu.memory_space<vmem>>, %arg6: memref<11x192xf32, #tpu.memory_space<vmem>>, %arg7: memref<8x128xf32, #tpu.memory_space<vmem>>) attributes {dimension_semantics = [], scalar_prefetch = 0 : i64, scratch_operands = 0 : i64, tpu.core_type = #tpu.core_type<tc>} {
    %c0 = arith.constant 0 : index
    %c0_0 = arith.constant 0 : index
    %c0_1 = arith.constant 0 : index
    %0 = vector.load %arg0[%c0, %c0_0, %c0_1] : memref<8x2x64xf32, #tpu.memory_space<vmem>>, vector<8x2x64xf32>
    %1 = vector.extract_strided_slice %0 {offsets = [0, 0, 0], sizes = [8, 1, 64], strides = [1, 1, 1]} : vector<8x2x64xf32> to vector<8x1x64xf32>
    %2 = vector.shape_cast %1 : vector<8x1x64xf32> to vector<8x64xf32>
    %c0_2 = arith.constant 0 : index
    %c0_3 = arith.constant 0 : index
    %3 = vector.load %arg6[%c0_2, %c0_3] : memref<11x192xf32, #tpu.memory_space<vmem>>, vector<11x192xf32>
    %4 = vector.extract_strided_slice %3 {offsets = [0, 0], sizes = [1, 192], strides = [1, 1]} : vector<11x192xf32> to vector<1x192xf32>
    %5 = vector.extract_strided_slice %3 {offsets = [1, 0], sizes = [1, 64], strides = [1, 1]} : vector<11x192xf32> to vector<1x64xf32>
    %6 = vector.extract_strided_slice %3 {offsets = [2, 0], sizes = [1, 64], strides = [1, 1]} : vector<11x192xf32> to vector<1x64xf32>
    %7 = vector.extract_strided_slice %3 {offsets = [3, 0], sizes = [1, 64], strides = [1, 1]} : vector<11x192xf32> to vector<1x64xf32>
    %8 = vector.extract_strided_slice %3 {offsets = [4, 0], sizes = [1, 128], strides = [1, 1]} : vector<11x192xf32> to vector<1x128xf32>
    %9 = vector.extract_strided_slice %3 {offsets = [5, 0], sizes = [1, 64], strides = [1, 1]} : vector<11x192xf32> to vector<1x64xf32>
    %10 = vector.extract_strided_slice %3 {offsets = [6, 0], sizes = [1, 64], strides = [1, 1]} : vector<11x192xf32> to vector<1x64xf32>
    %11 = vector.extract_strided_slice %3 {offsets = [7, 0], sizes = [1, 64], strides = [1, 1]} : vector<11x192xf32> to vector<1x64xf32>
    %12 = vector.extract_strided_slice %3 {offsets = [8, 0], sizes = [1, 64], strides = [1, 1]} : vector<11x192xf32> to vector<1x64xf32>
    %13 = vector.extract_strided_slice %3 {offsets = [9, 0], sizes = [1, 64], strides = [1, 1]} : vector<11x192xf32> to vector<1x64xf32>
    %14 = vector.extract_strided_slice %3 {offsets = [10, 0], sizes = [1, 128], strides = [1, 1]} : vector<11x192xf32> to vector<1x128xf32>
    %c0_4 = arith.constant 0 : index
    %c0_5 = arith.constant 0 : index
    %15 = vector.load %arg1[%c0_4, %c0_5] : memref<64x192xf32, #tpu.memory_space<vmem>>, vector<64x192xf32>
    %cst = arith.constant dense<0.000000e+00> : vector<8x192xf32>
    %16 = tpu.matmul %2, %15, %cst {dimension_numbers = #tpu.dot_dimension_numbers<[1], [0], [0], [1], [0, 0, 1, 1], [], []>} : vector<8x64xf32>, vector<64x192xf32>, vector<8x192xf32> -> vector<8x192xf32>
    %17 = vector.broadcast %4 : vector<1x192xf32> to vector<8x192xf32>
    %18 = arith.addf %16, %17 : vector<8x192xf32>
    %19 = vector.extract_strided_slice %18 {offsets = [0, 0], sizes = [8, 16], strides = [1, 1]} : vector<8x192xf32> to vector<8x16xf32>
    %20 = vector.extract_strided_slice %18 {offsets = [0, 16], sizes = [8, 16], strides = [1, 1]} : vector<8x192xf32> to vector<8x16xf32>
    %21 = vector.extract_strided_slice %18 {offsets = [0, 32], sizes = [8, 16], strides = [1, 1]} : vector<8x192xf32> to vector<8x16xf32>
    %22 = vector.extract_strided_slice %18 {offsets = [0, 48], sizes = [8, 16], strides = [1, 1]} : vector<8x192xf32> to vector<8x16xf32>
    %23 = vector.shape_cast %19 : vector<8x16xf32> to vector<1x8x16xf32>
    %24 = vector.shape_cast %20 : vector<8x16xf32> to vector<1x8x16xf32>
    %25 = vector.shape_cast %21 : vector<8x16xf32> to vector<1x8x16xf32>
    %26 = vector.shape_cast %22 : vector<8x16xf32> to vector<1x8x16xf32>
    %27 = tpu.concatenate %23, %24, %25, %26 in 0 : vector<1x8x16xf32>, vector<1x8x16xf32>, vector<1x8x16xf32>, vector<1x8x16xf32> -> vector<4x8x16xf32>
    %28 = vector.extract_strided_slice %18 {offsets = [0, 64], sizes = [8, 16], strides = [1, 1]} : vector<8x192xf32> to vector<8x16xf32>
    %29 = vector.extract_strided_slice %18 {offsets = [0, 80], sizes = [8, 16], strides = [1, 1]} : vector<8x192xf32> to vector<8x16xf32>
    %30 = vector.extract_strided_slice %18 {offsets = [0, 96], sizes = [8, 16], strides = [1, 1]} : vector<8x192xf32> to vector<8x16xf32>
    %31 = vector.extract_strided_slice %18 {offsets = [0, 112], sizes = [8, 16], strides = [1, 1]} : vector<8x192xf32> to vector<8x16xf32>
    %32 = vector.shape_cast %28 : vector<8x16xf32> to vector<1x8x16xf32>
    %33 = vector.shape_cast %29 : vector<8x16xf32> to vector<1x8x16xf32>
    %34 = vector.shape_cast %30 : vector<8x16xf32> to vector<1x8x16xf32>
    %35 = vector.shape_cast %31 : vector<8x16xf32> to vector<1x8x16xf32>
    %36 = tpu.concatenate %32, %33, %34, %35 in 0 : vector<1x8x16xf32>, vector<1x8x16xf32>, vector<1x8x16xf32>, vector<1x8x16xf32> -> vector<4x8x16xf32>
    %37 = vector.extract_strided_slice %18 {offsets = [0, 128], sizes = [8, 16], strides = [1, 1]} : vector<8x192xf32> to vector<8x16xf32>
    %38 = vector.extract_strided_slice %18 {offsets = [0, 144], sizes = [8, 16], strides = [1, 1]} : vector<8x192xf32> to vector<8x16xf32>
    %39 = vector.extract_strided_slice %18 {offsets = [0, 160], sizes = [8, 16], strides = [1, 1]} : vector<8x192xf32> to vector<8x16xf32>
    %40 = vector.extract_strided_slice %18 {offsets = [0, 176], sizes = [8, 16], strides = [1, 1]} : vector<8x192xf32> to vector<8x16xf32>
    %41 = vector.shape_cast %37 : vector<8x16xf32> to vector<1x8x16xf32>
    %42 = vector.shape_cast %38 : vector<8x16xf32> to vector<1x8x16xf32>
    %43 = vector.shape_cast %39 : vector<8x16xf32> to vector<1x8x16xf32>
    %44 = vector.shape_cast %40 : vector<8x16xf32> to vector<1x8x16xf32>
    %45 = tpu.concatenate %41, %42, %43, %44 in 0 : vector<1x8x16xf32>, vector<1x8x16xf32>, vector<1x8x16xf32>, vector<1x8x16xf32> -> vector<4x8x16xf32>
    "tpu.trace_start"() <{level = 10 : i32, message = "hqd,hkd->hqk"}> : () -> ()
    %cst_6 = arith.constant dense<0.000000e+00> : vector<4x8x8xf32>
    %46 = tpu.matmul %27, %36, %cst_6 {dimension_numbers = #tpu.dot_dimension_numbers<[2], [2], [1], [1], [0, 0, 0, 1, 1, 1], [0], [0]>} : vector<4x8x16xf32>, vector<4x8x16xf32>, vector<4x8x8xf32> -> vector<4x8x8xf32>
    "tpu.trace_stop"() : () -> ()
    %cst_7 = arith.constant 2.500000e-01 : f32
    %47 = vector.broadcast %cst_7 : f32 to vector<4x8x8xf32>
    %48 = arith.mulf %46, %47 : vector<4x8x8xf32>
    %cst_8 = arith.constant dense<0xFF800000> : vector<4x8xf32>
    %49 = vector.multi_reduction <maximumf>, %48, %cst_8 [2] : vector<4x8x8xf32> to vector<4x8xf32>
    %50 = vector.shape_cast %49 : vector<4x8xf32> to vector<4x8x1xf32>
    %51 = vector.broadcast %50 : vector<4x8x1xf32> to vector<4x8x8xf32>
    %52 = arith.subf %48, %51 : vector<4x8x8xf32>
    %53 = math.exp %52 : vector<4x8x8xf32>
    %cst_9 = arith.constant dense<0.000000e+00> : vector<4x8xf32>
    %54 = vector.multi_reduction <add>, %53, %cst_9 [2] : vector<4x8x8xf32> to vector<4x8xf32>
    %55 = vector.shape_cast %54 : vector<4x8xf32> to vector<4x8x1xf32>
    %56 = tpu.reciprocal %55 {approx = true} : vector<4x8x1xf32> -> vector<4x8x1xf32>
    %57 = vector.broadcast %56 : vector<4x8x1xf32> to vector<4x8x8xf32>
    %58 = arith.mulf %53, %57 : vector<4x8x8xf32>
    "tpu.trace_start"() <{level = 10 : i32, message = "hqk,hkd->hqd"}> : () -> ()
    %cst_10 = arith.constant dense<0.000000e+00> : vector<4x8x16xf32>
    %59 = tpu.matmul %58, %45, %cst_10 {dimension_numbers = #tpu.dot_dimension_numbers<[2], [1], [1], [2], [0, 0, 0, 1, 1, 2], [0], [0]>} : vector<4x8x8xf32>, vector<4x8x16xf32>, vector<4x8x16xf32> -> vector<4x8x16xf32>
    "tpu.trace_stop"() : () -> ()
    %60 = vector.extract_strided_slice %59 {offsets = [0, 0, 0], sizes = [1, 8, 16], strides = [1, 1, 1]} : vector<4x8x16xf32> to vector<1x8x16xf32>
    %61 = vector.shape_cast %60 : vector<1x8x16xf32> to vector<8x16xf32>
    %62 = vector.extract_strided_slice %59 {offsets = [1, 0, 0], sizes = [1, 8, 16], strides = [1, 1, 1]} : vector<4x8x16xf32> to vector<1x8x16xf32>
    %63 = vector.shape_cast %62 : vector<1x8x16xf32> to vector<8x16xf32>
    %64 = vector.extract_strided_slice %59 {offsets = [2, 0, 0], sizes = [1, 8, 16], strides = [1, 1, 1]} : vector<4x8x16xf32> to vector<1x8x16xf32>
    %65 = vector.shape_cast %64 : vector<1x8x16xf32> to vector<8x16xf32>
    %66 = vector.extract_strided_slice %59 {offsets = [3, 0, 0], sizes = [1, 8, 16], strides = [1, 1, 1]} : vector<4x8x16xf32> to vector<1x8x16xf32>
    %67 = vector.shape_cast %66 : vector<1x8x16xf32> to vector<8x16xf32>
    %68 = tpu.concatenate %61, %63, %65, %67 in 1 : vector<8x16xf32>, vector<8x16xf32>, vector<8x16xf32>, vector<8x16xf32> -> vector<8x64xf32>
    %c0_11 = arith.constant 0 : index
    %c0_12 = arith.constant 0 : index
    %69 = vector.load %arg2[%c0_11, %c0_12] : memref<64x64xf32, #tpu.memory_space<vmem>>, vector<64x64xf32>
    %cst_13 = arith.constant dense<0.000000e+00> : vector<8x64xf32>
    %70 = tpu.matmul %68, %69, %cst_13 {dimension_numbers = #tpu.dot_dimension_numbers<[1], [0], [0], [1], [0, 0, 1, 1], [], []>} : vector<8x64xf32>, vector<64x64xf32>, vector<8x64xf32> -> vector<8x64xf32>
    %71 = vector.broadcast %5 : vector<1x64xf32> to vector<8x64xf32>
    %72 = arith.addf %70, %71 : vector<8x64xf32>
    %73 = arith.addf %2, %72 : vector<8x64xf32>
    %cst_14 = arith.constant dense<0.000000e+00> : vector<8xf32>
    %74 = vector.multi_reduction <add>, %73, %cst_14 [1] : vector<8x64xf32> to vector<8xf32>
    %75 = vector.shape_cast %74 : vector<8xf32> to vector<8x1xf32>
    %cst_15 = arith.constant 6.400000e+01 : f32
    %76 = vector.broadcast %cst_15 : f32 to vector<8x1xf32>
    %77 = arith.divf %75, %76 : vector<8x1xf32>
    %78 = vector.broadcast %77 : vector<8x1xf32> to vector<8x64xf32>
    %79 = arith.subf %73, %78 : vector<8x64xf32>
    %80 = arith.mulf %79, %79 : vector<8x64xf32>
    %cst_16 = arith.constant dense<0.000000e+00> : vector<8xf32>
    %81 = vector.multi_reduction <add>, %80, %cst_16 [1] : vector<8x64xf32> to vector<8xf32>
    %82 = vector.shape_cast %81 : vector<8xf32> to vector<8x1xf32>
    %cst_17 = arith.constant 6.400000e+01 : f32
    %83 = vector.broadcast %cst_17 : f32 to vector<8x1xf32>
    %84 = arith.divf %82, %83 : vector<8x1xf32>
    %cst_18 = arith.constant 9.99999974E-6 : f32
    %85 = vector.broadcast %cst_18 : f32 to vector<8x1xf32>
    %86 = arith.addf %84, %85 : vector<8x1xf32>
    %87 = math.rsqrt %86 : vector<8x1xf32>
    %88 = vector.broadcast %87 : vector<8x1xf32> to vector<8x64xf32>
    %89 = arith.mulf %79, %88 : vector<8x64xf32>
    %90 = vector.broadcast %6 : vector<1x64xf32> to vector<8x64xf32>
    %91 = arith.mulf %89, %90 : vector<8x64xf32>
    %92 = vector.broadcast %7 : vector<1x64xf32> to vector<8x64xf32>
    %93 = arith.addf %91, %92 : vector<8x64xf32>
    %c0_19 = arith.constant 0 : index
    %c0_20 = arith.constant 0 : index
    %94 = vector.load %arg3[%c0_19, %c0_20] : memref<64x128xf32, #tpu.memory_space<vmem>>, vector<64x128xf32>
    %cst_21 = arith.constant dense<0.000000e+00> : vector<8x128xf32>
    %95 = tpu.matmul %93, %94, %cst_21 {dimension_numbers = #tpu.dot_dimension_numbers<[1], [0], [0], [1], [0, 0, 1, 1], [], []>} : vector<8x64xf32>, vector<64x128xf32>, vector<8x128xf32> -> vector<8x128xf32>
    %96 = vector.broadcast %8 : vector<1x128xf32> to vector<8x128xf32>
    %97 = arith.addf %95, %96 : vector<8x128xf32>
    %cst_22 = arith.constant 0.000000e+00 : f32
    %98 = vector.broadcast %cst_22 : f32 to vector<8x128xf32>
    %99 = arith.maximumf %97, %98 : vector<8x128xf32>
    %c0_23 = arith.constant 0 : index
    %c0_24 = arith.constant 0 : index
    %100 = vector.load %arg4[%c0_23, %c0_24] : memref<128x64xf32, #tpu.memory_space<vmem>>, vector<128x64xf32>
    %cst_25 = arith.constant dense<0.000000e+00> : vector<8x64xf32>
    %101 = tpu.matmul %99, %100, %cst_25 {dimension_numbers = #tpu.dot_dimension_numbers<[1], [0], [0], [1], [0, 0, 1, 1], [], []>} : vector<8x128xf32>, vector<128x64xf32>, vector<8x64xf32> -> vector<8x64xf32>
    %102 = vector.broadcast %9 : vector<1x64xf32> to vector<8x64xf32>
    %103 = arith.addf %101, %102 : vector<8x64xf32>
    %104 = arith.addf %93, %103 : vector<8x64xf32>
    %cst_26 = arith.constant dense<0.000000e+00> : vector<8xf32>
    %105 = vector.multi_reduction <add>, %104, %cst_26 [1] : vector<8x64xf32> to vector<8xf32>
    %106 = vector.shape_cast %105 : vector<8xf32> to vector<8x1xf32>
    %cst_27 = arith.constant 6.400000e+01 : f32
    %107 = vector.broadcast %cst_27 : f32 to vector<8x1xf32>
    %108 = arith.divf %106, %107 : vector<8x1xf32>
    %109 = vector.broadcast %108 : vector<8x1xf32> to vector<8x64xf32>
    %110 = arith.subf %104, %109 : vector<8x64xf32>
    %111 = arith.mulf %110, %110 : vector<8x64xf32>
    %cst_28 = arith.constant dense<0.000000e+00> : vector<8xf32>
    %112 = vector.multi_reduction <add>, %111, %cst_28 [1] : vector<8x64xf32> to vector<8xf32>
    %113 = vector.shape_cast %112 : vector<8xf32> to vector<8x1xf32>
    %cst_29 = arith.constant 6.400000e+01 : f32
    %114 = vector.broadcast %cst_29 : f32 to vector<8x1xf32>
    %115 = arith.divf %113, %114 : vector<8x1xf32>
    %cst_30 = arith.constant 9.99999974E-6 : f32
    %116 = vector.broadcast %cst_30 : f32 to vector<8x1xf32>
    %117 = arith.addf %115, %116 : vector<8x1xf32>
    %118 = math.rsqrt %117 : vector<8x1xf32>
    %119 = vector.broadcast %118 : vector<8x1xf32> to vector<8x64xf32>
    %120 = arith.mulf %110, %119 : vector<8x64xf32>
    %121 = vector.broadcast %10 : vector<1x64xf32> to vector<8x64xf32>
    %122 = arith.mulf %120, %121 : vector<8x64xf32>
    %123 = vector.broadcast %11 : vector<1x64xf32> to vector<8x64xf32>
    %124 = arith.addf %122, %123 : vector<8x64xf32>
    %cst_31 = arith.constant dense<0.000000e+00> : vector<8xf32>
    %125 = vector.multi_reduction <add>, %124, %cst_31 [1] : vector<8x64xf32> to vector<8xf32>
    %126 = vector.shape_cast %125 : vector<8xf32> to vector<8x1xf32>
    %cst_32 = arith.constant 6.400000e+01 : f32
    %127 = vector.broadcast %cst_32 : f32 to vector<8x1xf32>
    %128 = arith.divf %126, %127 : vector<8x1xf32>
    %129 = vector.broadcast %128 : vector<8x1xf32> to vector<8x64xf32>
    %130 = arith.subf %124, %129 : vector<8x64xf32>
    %131 = arith.mulf %130, %130 : vector<8x64xf32>
    %cst_33 = arith.constant dense<0.000000e+00> : vector<8xf32>
    %132 = vector.multi_reduction <add>, %131, %cst_33 [1] : vector<8x64xf32> to vector<8xf32>
    %133 = vector.shape_cast %132 : vector<8xf32> to vector<8x1xf32>
    %cst_34 = arith.constant 6.400000e+01 : f32
    %134 = vector.broadcast %cst_34 : f32 to vector<8x1xf32>
    %135 = arith.divf %133, %134 : vector<8x1xf32>
    %cst_35 = arith.constant 9.99999974E-6 : f32
    %136 = vector.broadcast %cst_35 : f32 to vector<8x1xf32>
    %137 = arith.addf %135, %136 : vector<8x1xf32>
    %138 = math.rsqrt %137 : vector<8x1xf32>
    %139 = vector.broadcast %138 : vector<8x1xf32> to vector<8x64xf32>
    %140 = arith.mulf %130, %139 : vector<8x64xf32>
    %141 = vector.broadcast %12 : vector<1x64xf32> to vector<8x64xf32>
    %142 = arith.mulf %140, %141 : vector<8x64xf32>
    %143 = vector.broadcast %13 : vector<1x64xf32> to vector<8x64xf32>
    %144 = arith.addf %142, %143 : vector<8x64xf32>
    %c0_36 = arith.constant 0 : index
    %c0_37 = arith.constant 0 : index
    %145 = vector.load %arg5[%c0_36, %c0_37] : memref<64x128xf32, #tpu.memory_space<vmem>>, vector<64x128xf32>
    %cst_38 = arith.constant dense<0.000000e+00> : vector<8x128xf32>
    %146 = tpu.matmul %144, %145, %cst_38 {dimension_numbers = #tpu.dot_dimension_numbers<[1], [0], [0], [1], [0, 0, 1, 1], [], []>} : vector<8x64xf32>, vector<64x128xf32>, vector<8x128xf32> -> vector<8x128xf32>
    %147 = vector.broadcast %14 : vector<1x128xf32> to vector<8x128xf32>
    %148 = arith.addf %146, %147 : vector<8x128xf32>
    %c0_39 = arith.constant 0 : index
    %c0_40 = arith.constant 0 : index
    %149 = vector.load %arg7[%c0_39, %c0_40] : memref<8x128xf32, #tpu.memory_space<vmem>>, vector<8x128xf32>
    tpu.vector_store %arg7[%c0_39, %c0_40], %148 {strides = array<i32>} : memref<8x128xf32, #tpu.memory_space<vmem>>, vector<8x128xf32>,
    return
  }
}

</mosaic_0001>

<llo_original>
// kernel: vit_forward.1
$region0: #{vit_forward.1}
  #allocation0 [shape = 'u32[]', space=smem, size = 0x4, offset = 0x4, fixed_abs, tag = 'smem constant byte address 0x4 - core index']
  #allocation1 [shape = 'u32[72,128]{1,0:T(1,128)}', space=vmem, size = 0x9000, scoped, tag = 'internal scratch']
  %s0 = inlined_call_operand.hbm [shape: f32[8,2,64], index: 0, kind: input, shape index: {}]
  %s1 = inlined_call_operand.vmem [shape: f32[64,192], index: 1, kind: input, shape index: {}]
  %s2 = inlined_call_operand.vmem [shape: f32[64,64], index: 2, kind: input, shape index: {}]
  %s3 = inlined_call_operand.hbm [shape: f32[64,128], index: 3, kind: input, shape index: {}]
  %s4 = inlined_call_operand.vmem [shape: f32[128,64], index: 4, kind: input, shape index: {}]
  %s5 = inlined_call_operand.hbm [shape: f32[64,128], index: 5, kind: input, shape index: {}]
  %s6 = inlined_call_operand.hbm [shape: f32[11,192], index: 6, kind: input, shape index: {}]
  %s7 = inlined_call_operand.hbm [shape: f32[8,128], index: 7, kind: output, shape index: {}]
  %s8 = sld [smem:[#allocation0]]
  $region54: #{vit_forward.1} parent=0
    _
  %s10 = ssub.s32 1, %s8
  %s11 = scalar_select 0, %s10, %s8
  $region1: #{vit_forward.1} parent=0
    #allocation2 [shape = 'u8[8192]{0}', space=vmem, size = 0x2000, scoped, tag = 'input window, operand 0, single buffered']
    #allocation3 [shape = 's32[1]{0}', space=sflag, size = 0x4, scoped, tag = 'scoped memory for vit_forward.1']
    #allocation4 [shape = 's32[1]{0}', space=sflag, size = 0x4, scoped, tag = 'scoped memory for vit_forward.1']
    #allocation5 [shape = 'u8[32768]{0}', space=vmem, size = 0x8000, scoped, tag = 'input window, operand 3, single buffered']
    #allocation6 [shape = 's32[1]{0}', space=sflag, size = 0x4, scoped, tag = 'scoped memory for vit_forward.1']
    #allocation7 [shape = 'u8[32768]{0}', space=vmem, size = 0x8000, scoped, tag = 'input window, operand 5, single buffered']
    #allocation8 [shape = 'u8[16384]{0}', space=vmem, size = 0x4000, scoped, tag = 'input window, operand 6, single buffered']
    #allocation9 [shape = 's32[1]{0}', space=sflag, size = 0x4, scoped, tag = 'scoped memory for vit_forward.1']
    #allocation10 [shape = 'u8[4096]{0}', space=vmem, size = 0x1000, scoped, tag = 'output window, operand 0, single buffered']
    %12 = vsyncpa [#allocation3], 0
    %13 = vsyncpa [#allocation6], 0
    %14 = vsyncpa [#allocation9], 0
    %15 = vsyncpa [#allocation4], 0
    // Predicated region
    $region2: #{vit_forward.1} parent=1 // pred_check
      _
    $region3: #{vit_forward.1} parent=1 // pred_check_branch
      %17 = sbr.rel (0) target = $region5
    $region4: #{vit_forward.1} parent=1 // pred_region
      %19 = vsyncadd [#allocation3], 0
      %s20 = sshll.u32 %s0, 4
      %s21 = int_to_ptr.hbm [resolvable:$true] %s20
      %s22 = sshll.u32 [#allocation2], 4
      %s23 = int_to_ptr.vmem [resolvable:$true] %s22
      %28 = dma.hbm_to_vmem [thread:$0]  %s21, 256, %s23, [#allocation3], 32, 32, 2
    $region5: #{vit_forward.1} parent=1 // pred_fallthru
      _
    // Predicated region
    $region6: #{vit_forward.1} parent=1 // pred_check
      _
    $region7: #{vit_forward.1} parent=1 // pred_check_branch
      %30 = sbr.rel (0) target = $region9
    $region8: #{vit_forward.1} parent=1 // pred_region
      _
    $region9: #{vit_forward.1} parent=1 // pred_fallthru
      _
    // Predicated region
    $region10: #{vit_forward.1} parent=1 // pred_check
      _
    $region11: #{vit_forward.1} parent=1 // pred_check_branch
      %32 = sbr.rel (0) target = $region13
    $region12: #{vit_forward.1} parent=1 // pred_region
      _
    $region13: #{vit_forward.1} parent=1 // pred_fallthru
      _
    // Predicated region
    $region14: #{vit_forward.1} parent=1 // pred_check
      _
    $region15: #{vit_forward.1} parent=1 // pred_check_branch
      %34 = sbr.rel (0) target = $region17
    $region16: #{vit_forward.1} parent=1 // pred_region
      %36 = vsyncadd [#allocation6], 0
      %s37 = sshll.u32 %s3, 4
      %s38 = int_to_ptr.hbm [resolvable:$true] %s37
      %s39 = sshll.u32 [#allocation5], 4
      %s40 = int_to_ptr.vmem [resolvable:$true] %s39
      %45 = dma.hbm_to_vmem [thread:$0]  %s38, 1024, %s40, [#allocation6], 128, 128, 8
    $region17: #{vit_forward.1} parent=1 // pred_fallthru
      _
    // Predicated region
    $region18: #{vit_forward.1} parent=1 // pred_check
      _
    $region19: #{vit_forward.1} parent=1 // pred_check_branch
      %47 = sbr.rel (0) target = $region21
    $region20: #{vit_forward.1} parent=1 // pred_region
      _
    $region21: #{vit_forward.1} parent=1 // pred_fallthru
      _
    // Predicated region
    $region22: #{vit_forward.1} parent=1 // pred_check
      _
    $region23: #{vit_forward.1} parent=1 // pred_check_branch
      %49 = sbr.rel (0) target = $region25
    $region24: #{vit_forward.1} parent=1 // pred_region
      %51 = vsyncadd [#allocation6], 0
      %s52 = sshll.u32 %s5, 4
      %s53 = int_to_ptr.hbm [resolvable:$true] %s52
      %s54 = sshll.u32 [#allocation7], 4
      %s55 = int_to_ptr.vmem [resolvable:$true] %s54
      %60 = dma.hbm_to_vmem [thread:$0]  %s53, 1024, %s55, [#allocation6], 128, 128, 8
    $region25: #{vit_forward.1} parent=1 // pred_fallthru
      _
    // Predicated region
    $region26: #{vit_forward.1} parent=1 // pred_check
      _
    $region27: #{vit_forward.1} parent=1 // pred_check_branch
      %62 = sbr.rel (0) target = $region29
    $region28: #{vit_forward.1} parent=1 // pred_region
      %64 = vsyncadd [#allocation9], 0
      %s65 = sshll.u32 %s6, 4
      %s66 = int_to_ptr.hbm [resolvable:$true] %s65
      %s67 = sshll.u32 [#allocation8], 4
      %s68 = int_to_ptr.vmem [resolvable:$true] %s67
      %73 = dma.hbm_to_vmem [thread:$0]  %s66, 512, %s68, [#allocation9], 256, 256, 16
    $region29: #{vit_forward.1} parent=1 // pred_fallthru
      _
    // Predicated region
    $region30: #{vit_forward.1} parent=1 // pred_check
      _
    $region31: #{vit_forward.1} parent=1 // pred_check_branch
      %75 = sbr.rel (0) target = $region33
    $region32: #{vit_forward.1} parent=1 // pred_region
      %77 = dma.done [#allocation3], 256
    $region33: #{vit_forward.1} parent=1 // pred_fallthru
      _
    // Predicated region
    $region34: #{vit_forward.1} parent=1 // pred_check
      _
    $region35: #{vit_forward.1} parent=1 // pred_check_branch
      %79 = sbr.rel (0) target = $region37
    $region36: #{vit_forward.1} parent=1 // pred_region
      %81 = dma.done [#allocation6], 1024
    $region37: #{vit_forward.1} parent=1 // pred_fallthru
      _
    // Predicated region
    $region38: #{vit_forward.1} parent=1 // pred_check
      _
    $region39: #{vit_forward.1} parent=1 // pred_check_branch
      %83 = sbr.rel (0) target = $region41
    $region40: #{vit_forward.1} parent=1 // pred_region
      %85 = dma.done [#allocation6], 1024
    $region41: #{vit_forward.1} parent=1 // pred_fallthru
      _
    // Predicated region
    $region42: #{vit_forward.1} parent=1 // pred_check
      _
    $region43: #{vit_forward.1} parent=1 // pred_check_branch
      %87 = sbr.rel (0) target = $region45
    $region44: #{vit_forward.1} parent=1 // pred_region
      %89 = dma.done [#allocation9], 512
    $region45: #{vit_forward.1} parent=1 // pred_fallthru
      _
    %v90 = vld [vmem:[#allocation2] sm:$0x3]
    %v91 = vld [vmem:[#allocation2 + $0x2] sm:$0x3]
    %v92 = vld [vmem:[#allocation2 + $0x4] sm:$0x3]
    %v93 = vld [vmem:[#allocation2 + $0x6] sm:$0x3]
    %v94 = vld [vmem:[#allocation2 + $0x8] sm:$0x3]
    %v95 = vld [vmem:[#allocation2 + $0xa] sm:$0x3]
    %v96 = vld [vmem:[#allocation2 + $0xc] sm:$0x3]
    %v97 = vld [vmem:[#allocation2 + $0xe] sm:$0x3]
    %v98 = vld [vmem:[#allocation8] sm:$0xff]
    %v99 = vld [vmem:[#allocation8 + $0x8] sm:$0xff]
    %v100 = vld [vmem:[#allocation8 + $0x10] sm:$0x7]
    %v101 = vld [vmem:[%s1] sm:$0xff]
    %v102 = vld [vmem:[%s1 + $0x8] sm:$0xff]
    %v103 = vld [vmem:[%s1 + $0x10] sm:$0xff]
    %v104 = vld [vmem:[%s1 + $0x18] sm:$0xff]
    %v105 = vld [vmem:[%s1 + $0x20] sm:$0xff]
    %v106 = vld [vmem:[%s1 + $0x28] sm:$0xff]
    %v107 = vld [vmem:[%s1 + $0x30] sm:$0xff]
    %v108 = vld [vmem:[%s1 + $0x38] sm:$0xff]
    %v109 = vld [vmem:[%s1 + $0x40] sm:$0xff]
    %v110 = vld [vmem:[%s1 + $0x48] sm:$0xff]
    %v111 = vld [vmem:[%s1 + $0x50] sm:$0xff]
    %v112 = vld [vmem:[%s1 + $0x58] sm:$0xff]
    %v113 = vld [vmem:[%s1 + $0x60] sm:$0xff]
    %v114 = vld [vmem:[%s1 + $0x68] sm:$0xff]
    %v115 = vld [vmem:[%s1 + $0x70] sm:$0xff]
    %v116 = vld [vmem:[%s1 + $0x78] sm:$0xff]
    %v117 = vperm.slane %v98, 0
    %v118 = vperm.slane %v99, 0
    %v127 = vrot.slane %v91, 7
    %vm128 = vcmask 1041409
    %v129 = vsel %vm128, %v127, %v90
    %v130 = vrot.slane %v92, 6
    %vm131 = vcmask 1042434
    %v132 = vsel %vm131, %v130, %v129
    %v133 = vrot.slane %v93, 5
    %vm134 = vcmask 1043459
    %v135 = vsel %vm134, %v133, %v132
    %v136 = vrot.slane %v94, 4
    %vm137 = vcmask 1044484
    %v138 = vsel %vm137, %v136, %v135
    %v139 = vrot.slane %v95, 3
    %vm140 = vcmask 1045509
    %v141 = vsel %vm140, %v139, %v138
    %v142 = vrot.slane %v96, 2
    %vm143 = vcmask 1046534
    %v144 = vsel %vm143, %v142, %v141
    %v145 = vrot.slane %v97, 1
    %vm146 = vcmask 1047559
    %v147 = vsel %vm146, %v145, %v144
    %vm148 = vcmask 523264
    %v149 = vsel %vm148, %v147, 0
    %151 = vmatpush.msra.mxu0 0.0
    %152 = vmatpush.msra.mxu0 0.0
    %153 = vmatpush.msra.mxu0 0.0
    %154 = vmatpush.msra.mxu0 0.0
    %155 = vmatpush.msra.mxu0 0.0
    %156 = vmatpush.msra.mxu0 0.0
    %157 = vmatpush.msra.mxu0 0.0
    %158 = vmatpush.msra.mxu0 0.0
    %159 = vmatpush.msra.mxu0 %v115
    %160 = vmatpush.msra.mxu0 %v113
    %161 = vmatpush.msra.mxu0 %v111
    %162 = vmatpush.msra.mxu0 %v109
    %163 = vmatpush.msra.mxu0 %v107
    %164 = vmatpush.msra.mxu0 %v105
    %165 = vmatpush.msra.mxu0 %v103
    %166 = vmatpush.msra.mxu0 %v101
    %167 = vmatmul.f32.gmra.mxu0 %v149
    %v168 = vpop.f32.mrf.mxu0
    %v169 = vadd.f32 %v117, %v168
    %170 = vdwg.mxu0
    %171 = vmatpush.msra.mxu0 0.0
    %172 = vmatpush.msra.mxu0 0.0
    %173 = vmatpush.msra.mxu0 0.0
    %174 = vmatpush.msra.mxu0 0.0
    %175 = vmatpush.msra.mxu0 0.0
    %176 = vmatpush.msra.mxu0 0.0
    %177 = vmatpush.msra.mxu0 0.0
    %178 = vmatpush.msra.mxu0 0.0
    %179 = vmatpush.msra.mxu0 %v116
    %180 = vmatpush.msra.mxu0 %v114
    %181 = vmatpush.msra.mxu0 %v112
    %182 = vmatpush.msra.mxu0 %v110
    %183 = vmatpush.msra.mxu0 %v108
    %184 = vmatpush.msra.mxu0 %v106
    %185 = vmatpush.msra.mxu0 %v104
    %186 = vmatpush.msra.mxu0 %v102
    %187 = vmatmul.f32.gmra.mxu0 %v149
    %v188 = vpop.f32.mrf.mxu0
    %v189 = vadd.f32 %v118, %v188
    %190 = vdwg.mxu0
    %192 = vrot.lane.b32.xlu0 %v169, 112
    %v193 = vpop.permute.xlu0 %192
    %194 = vrot.lane.b32.xlu0 %v169, 96
    %v195 = vpop.permute.xlu0 %194
    %196 = vrot.lane.b32.xlu0 %v169, 80
    %v197 = vpop.permute.xlu0 %196
    %199 = vrot.lane.b32.xlu0 %v189, 112
    %v200 = vpop.permute.xlu0 %199
    %202 = vrot.lane.b32.xlu0 %v189, 96
    %v203 = vpop.permute.xlu0 %202
    %205 = vrot.lane.b32.xlu0 %v189, 80
    %v206 = vpop.permute.xlu0 %205
    %208 = vrot.lane.b32.xlu0 %v169, 64
    %v209 = vpop.permute.xlu0 %208
    %vm210 = vcmask 130048
    %v211 = vsel %vm210, %v169, 0
    %v213 = vsel %vm210, %v209, 0
    %215 = vmatpush.xpose.msra.mxu0 0.0
    %216 = vmatpush.xpose.msra.mxu0 0.0
    %217 = vmatpush.xpose.msra.mxu0 0.0
    %218 = vmatpush.xpose.msra.mxu0 0.0
    %219 = vmatpush.xpose.msra.mxu0 0.0
    %220 = vmatpush.xpose.msra.mxu0 0.0
    %221 = vmatpush.xpose.msra.mxu0 0.0
    %222 = vmatpush.xpose.msra.mxu0 0.0
    %223 = vmatpush.xpose.msra.mxu0 0.0
    %224 = vmatpush.xpose.msra.mxu0 0.0
    %225 = vmatpush.xpose.msra.mxu0 0.0
    %226 = vmatpush.xpose.msra.mxu0 0.0
    %227 = vmatpush.xpose.msra.mxu0 0.0
    %228 = vmatpush.xpose.msra.mxu0 0.0
    %229 = vmatpush.xpose.msra.mxu0 0.0
    %230 = vmatpush.xpose.msra.mxu0 %v213
    %231 = vmatmul.f32.gmra.mxu0 %v211
    %v232 = vpop.f32.mrf.mxu0
    %v233 = vadd.f32 0.0, %v232
    %234 = vdwg.mxu0
    %235 = vrot.lane.b32.xlu0 %v193, 64
    %v236 = vpop.permute.xlu0 %235
    %v237 = vsel %vm210, %v193, 0
    %v239 = vsel %vm210, %v236, 0
    %241 = vmatpush.xpose.msra.mxu0 0.0
    %242 = vmatpush.xpose.msra.mxu0 0.0
    %243 = vmatpush.xpose.msra.mxu0 0.0
    %244 = vmatpush.xpose.msra.mxu0 0.0
    %245 = vmatpush.xpose.msra.mxu0 0.0
    %246 = vmatpush.xpose.msra.mxu0 0.0
    %247 = vmatpush.xpose.msra.mxu0 0.0
    %248 = vmatpush.xpose.msra.mxu0 0.0
    %249 = vmatpush.xpose.msra.mxu0 0.0
    %250 = vmatpush.xpose.msra.mxu0 0.0
    %251 = vmatpush.xpose.msra.mxu0 0.0
    %252 = vmatpush.xpose.msra.mxu0 0.0
    %253 = vmatpush.xpose.msra.mxu0 0.0
    %254 = vmatpush.xpose.msra.mxu0 0.0
    %255 = vmatpush.xpose.msra.mxu0 0.0
    %256 = vmatpush.xpose.msra.mxu0 %v239
    %257 = vmatmul.f32.gmra.mxu0 %v237
    %v258 = vpop.f32.mrf.mxu0
    %v259 = vadd.f32 0.0, %v258
    %260 = vdwg.mxu0
    %261 = vrot.lane.b32.xlu0 %v195, 64
    %v262 = vpop.permute.xlu0 %261
    %v263 = vsel %vm210, %v195, 0
    %v265 = vsel %vm210, %v262, 0
    %267 = vmatpush.xpose.msra.mxu0 0.0
    %268 = vmatpush.xpose.msra.mxu0 0.0
    %269 = vmatpush.xpose.msra.mxu0 0.0
    %270 = vmatpush.xpose.msra.mxu0 0.0
    %271 = vmatpush.xpose.msra.mxu0 0.0
    %272 = vmatpush.xpose.msra.mxu0 0.0
    %273 = vmatpush.xpose.msra.mxu0 0.0
    %274 = vmatpush.xpose.msra.mxu0 0.0
    %275 = vmatpush.xpose.msra.mxu0 0.0
    %276 = vmatpush.xpose.msra.mxu0 0.0
    %277 = vmatpush.xpose.msra.mxu0 0.0
    %278 = vmatpush.xpose.msra.mxu0 0.0
    %279 = vmatpush.xpose.msra.mxu0 0.0
    %280 = vmatpush.xpose.msra.mxu0 0.0
    %281 = vmatpush.xpose.msra.mxu0 0.0
    %282 = vmatpush.xpose.msra.mxu0 %v265
    %283 = vmatmul.f32.gmra.mxu0 %v263
    %v284 = vpop.f32.mrf.mxu0
    %v285 = vadd.f32 0.0, %v284
    %286 = vdwg.mxu0
    %287 = vrot.lane.b32.xlu0 %v197, 64
    %v288 = vpop.permute.xlu0 %287
    %v289 = vsel %vm210, %v197, 0
    %v291 = vsel %vm210, %v288, 0
    %293 = vmatpush.xpose.msra.mxu0 0.0
    %294 = vmatpush.xpose.msra.mxu0 0.0
    %295 = vmatpush.xpose.msra.mxu0 0.0
    %296 = vmatpush.xpose.msra.mxu0 0.0
    %297 = vmatpush.xpose.msra.mxu0 0.0
    %298 = vmatpush.xpose.msra.mxu0 0.0
    %299 = vmatpush.xpose.msra.mxu0 0.0
    %300 = vmatpush.xpose.msra.mxu0 0.0
    %301 = vmatpush.xpose.msra.mxu0 0.0
    %302 = vmatpush.xpose.msra.mxu0 0.0
    %303 = vmatpush.xpose.msra.mxu0 0.0
    %304 = vmatpush.xpose.msra.mxu0 0.0
    %305 = vmatpush.xpose.msra.mxu0 0.0
    %306 = vmatpush.xpose.msra.mxu0 0.0
    %307 = vmatpush.xpose.msra.mxu0 0.0
    %308 = vmatpush.xpose.msra.mxu0 %v291
    %309 = vmatmul.f32.gmra.mxu0 %v289
    %v310 = vpop.f32.mrf.mxu0
    %v311 = vadd.f32 0.0, %v310
    %312 = vdwg.mxu0
    %v313 = vmul.f32 %v233, 0.25
    %v314 = vmul.f32 %v259, 0.25
    %v315 = vmul.f32 %v285, 0.25
    %v316 = vmul.f32 %v311, 0.25
    %vm317 = vcmask 64512
    %v318 = vsel %vm317, %v313, -inf
    %319 = vmax.xlane.f32.xlu0 %v318
    %v320 = vpop.xlane.xlu0 %319
    %v321 = vsel %vm317, %v314, -inf
    %322 = vmax.xlane.f32.xlu0 %v321
    %v323 = vpop.xlane.xlu0 %322
    %v324 = vsel %vm317, %v315, -inf
    %325 = vmax.xlane.f32.xlu0 %v324
    %v326 = vpop.xlane.xlu0 %325
    %v327 = vsel %vm317, %v316, -inf
    %328 = vmax.xlane.f32.xlu0 %v327
    %v329 = vpop.xlane.xlu0 %328
    %v330 = vsub.f32 %v313, %v320
    %v331 = vsub.f32 %v314, %v323
    %v332 = vsub.f32 %v315, %v326
    %v333 = vsub.f32 %v316, %v329
    %v334 = vmul.f32 %v330, 1.442695
    %v335 = vpow.pop %v334
    %v336 = vmul.f32 %v331, 1.442695
    %v337 = vpow.pop %v336
    %v338 = vmul.f32 %v332, 1.442695
    %v339 = vpow.pop %v338
    %v340 = vmul.f32 %v333, 1.442695
    %v341 = vpow.pop %v340
    %v342 = vsel %vm317, %v335, 0.0
    %343 = vadd.xlane.f32.xlu0 %v342
    %v344 = vpop.xlane.xlu0 %343
    %v345 = vsel %vm317, %v337, 0.0
    %346 = vadd.xlane.f32.xlu0 %v345
    %v347 = vpop.xlane.xlu0 %346
    %v348 = vsel %vm317, %v339, 0.0
    %349 = vadd.xlane.f32.xlu0 %v348
    %v350 = vpop.xlane.xlu0 %349
    %v351 = vsel %vm317, %v341, 0.0
    %352 = vadd.xlane.f32.xlu0 %v351
    %v353 = vpop.xlane.xlu0 %352
    %v354 = vrcp.pop %v344
    %v355 = vrcp.pop %v347
    %v356 = vrcp.pop %v350
    %v357 = vrcp.pop %v353
    %v358 = vmul.f32 %v335, %v354
    %v359 = vmul.f32 %v337, %v355
    %v360 = vmul.f32 %v339, %v356
    %v361 = vmul.f32 %v341, %v357
    %v363 = vsel %vm317, %v358, 0
    %365 = vmatpush.msra.mxu0 0.0
    %366 = vmatpush.msra.mxu0 0.0
    %367 = vmatpush.msra.mxu0 0.0
    %368 = vmatpush.msra.mxu0 0.0
    %369 = vmatpush.msra.mxu0 0.0
    %370 = vmatpush.msra.mxu0 0.0
    %371 = vmatpush.msra.mxu0 0.0
    %372 = vmatpush.msra.mxu0 0.0
    %373 = vmatpush.msra.mxu0 0.0
    %374 = vmatpush.msra.mxu0 0.0
    %375 = vmatpush.msra.mxu0 0.0
    %376 = vmatpush.msra.mxu0 0.0
    %377 = vmatpush.msra.mxu0 0.0
    %378 = vmatpush.msra.mxu0 0.0
    %379 = vmatpush.msra.mxu0 0.0
    %380 = vmatpush.msra.mxu0 %v189
    %381 = vmatmul.f32.gmra.mxu0 %v363
    %v382 = vpop.f32.mrf.mxu0
    %v383 = vadd.f32 0.0, %v382
    %384 = vdwg.mxu0
    %v386 = vsel %vm317, %v359, 0
    %388 = vmatpush.msra.mxu0 0.0
    %389 = vmatpush.msra.mxu0 0.0
    %390 = vmatpush.msra.mxu0 0.0
    %391 = vmatpush.msra.mxu0 0.0
    %392 = vmatpush.msra.mxu0 0.0
    %393 = vmatpush.msra.mxu0 0.0
    %394 = vmatpush.msra.mxu0 0.0
    %395 = vmatpush.msra.mxu0 0.0
    %396 = vmatpush.msra.mxu0 0.0
    %397 = vmatpush.msra.mxu0 0.0
    %398 = vmatpush.msra.mxu0 0.0
    %399 = vmatpush.msra.mxu0 0.0
    %400 = vmatpush.msra.mxu0 0.0
    %401 = vmatpush.msra.mxu0 0.0
    %402 = vmatpush.msra.mxu0 0.0
    %403 = vmatpush.msra.mxu0 %v200
    %404 = vmatmul.f32.gmra.mxu0 %v386
    %v405 = vpop.f32.mrf.mxu0
    %v406 = vadd.f32 0.0, %v405
    %407 = vdwg.mxu0
    %v409 = vsel %vm317, %v360, 0
    %411 = vmatpush.msra.mxu0 0.0
    %412 = vmatpush.msra.mxu0 0.0
    %413 = vmatpush.msra.mxu0 0.0
    %414 = vmatpush.msra.mxu0 0.0
    %415 = vmatpush.msra.mxu0 0.0
    %416 = vmatpush.msra.mxu0 0.0
    %417 = vmatpush.msra.mxu0 0.0
    %418 = vmatpush.msra.mxu0 0.0
    %419 = vmatpush.msra.mxu0 0.0
    %420 = vmatpush.msra.mxu0 0.0
    %421 = vmatpush.msra.mxu0 0.0
    %422 = vmatpush.msra.mxu0 0.0
    %423 = vmatpush.msra.mxu0 0.0
    %424 = vmatpush.msra.mxu0 0.0
    %425 = vmatpush.msra.mxu0 0.0
    %426 = vmatpush.msra.mxu0 %v203
    %427 = vmatmul.f32.gmra.mxu0 %v409
    %v428 = vpop.f32.mrf.mxu0
    %v429 = vadd.f32 0.0, %v428
    %430 = vdwg.mxu0
    %v432 = vsel %vm317, %v361, 0
    %434 = vmatpush.msra.mxu0 0.0
    %435 = vmatpush.msra.mxu0 0.0
    %436 = vmatpush.msra.mxu0 0.0
    %437 = vmatpush.msra.mxu0 0.0
    %438 = vmatpush.msra.mxu0 0.0
    %439 = vmatpush.msra.mxu0 0.0
    %440 = vmatpush.msra.mxu0 0.0
    %441 = vmatpush.msra.mxu0 0.0
    %442 = vmatpush.msra.mxu0 0.0
    %443 = vmatpush.msra.mxu0 0.0
    %444 = vmatpush.msra.mxu0 0.0
    %445 = vmatpush.msra.mxu0 0.0
    %446 = vmatpush.msra.mxu0 0.0
    %447 = vmatpush.msra.mxu0 0.0
    %448 = vmatpush.msra.mxu0 0.0
    %449 = vmatpush.msra.mxu0 %v206
    %450 = vmatmul.f32.gmra.mxu0 %v432
    %v451 = vpop.f32.mrf.mxu0
    %v452 = vadd.f32 0.0, %v451
    %453 = vdwg.mxu0
    %455 = vrot.lane.b32.xlu0 %v406, 16
    %v456 = vpop.permute.xlu0 %455
    %459 = vrot.lane.b32.xlu0 %v429, 32
    %v460 = vpop.permute.xlu0 %459
    %463 = vrot.lane.b32.xlu0 %v452, 48
    %v464 = vpop.permute.xlu0 %463
    %v466 = vsel %vm210, %v383, %v456
    %vm467 = vcmask 261120
    %v468 = vsel %vm467, %v466, %v460
    %vm469 = vcmask 392192
    %v470 = vsel %vm469, %v468, %v464
    %v471 = vld [vmem:[%s2] sm:$0xff]
    %v472 = vld [vmem:[%s2 + $0x8] sm:$0xff]
    %v473 = vld [vmem:[%s2 + $0x10] sm:$0xff]
    %v474 = vld [vmem:[%s2 + $0x18] sm:$0xff]
    %v475 = vld [vmem:[%s2 + $0x20] sm:$0xff]
    %v476 = vld [vmem:[%s2 + $0x28] sm:$0xff]
    %v477 = vld [vmem:[%s2 + $0x30] sm:$0xff]
    %v478 = vld [vmem:[%s2 + $0x38] sm:$0xff]
    %v479 = vperm.slane %v98, 1
    %v481 = vsel %vm148, %v470, 0
    %483 = vmatpush.msra.mxu0 0.0
    %484 = vmatpush.msra.mxu0 0.0
    %485 = vmatpush.msra.mxu0 0.0
    %486 = vmatpush.msra.mxu0 0.0
    %487 = vmatpush.msra.mxu0 0.0
    %488 = vmatpush.msra.mxu0 0.0
    %489 = vmatpush.msra.mxu0 0.0
    %490 = vmatpush.msra.mxu0 0.0
    %491 = vmatpush.msra.mxu0 %v478
    %492 = vmatpush.msra.mxu0 %v477
    %493 = vmatpush.msra.mxu0 %v476
    %494 = vmatpush.msra.mxu0 %v475
    %495 = vmatpush.msra.mxu0 %v474
    %496 = vmatpush.msra.mxu0 %v473
    %497 = vmatpush.msra.mxu0 %v472
    %498 = vmatpush.msra.mxu0 %v471
    %499 = vmatmul.f32.gmra.mxu0 %v481
    %v500 = vpop.f32.mrf.mxu0
    %v501 = vadd.f32 %v479, %v500
    %502 = vdwg.mxu0
    %v504 = vrot.slane %v501, 1
    %v505 = vrot.slane %v501, 2
    %v506 = vrot.slane %v501, 3
    %v507 = vrot.slane %v501, 4
    %v508 = vrot.slane %v501, 5
    %v509 = vrot.slane %v501, 6
    %v510 = vrot.slane %v501, 7
    %v519 = vadd.f32 %v90, %v501
    %v520 = vadd.f32 %v91, %v504
    %v521 = vadd.f32 %v92, %v505
    %v522 = vadd.f32 %v93, %v506
    %v523 = vadd.f32 %v94, %v507
    %v524 = vadd.f32 %v95, %v508
    %v525 = vadd.f32 %v96, %v509
    %v526 = vadd.f32 %v97, %v510
    %v535 = vrot.slane %v520, 7
    %v536 = vsel %vm128, %v535, %v519
    %v537 = vrot.slane %v521, 6
    %v538 = vsel %vm131, %v537, %v536
    %v539 = vrot.slane %v522, 5
    %v540 = vsel %vm134, %v539, %v538
    %v541 = vrot.slane %v523, 4
    %v542 = vsel %vm137, %v541, %v540
    %v543 = vrot.slane %v524, 3
    %v544 = vsel %vm140, %v543, %v542
    %v545 = vrot.slane %v525, 2
    %v546 = vsel %vm143, %v545, %v544
    %v547 = vrot.slane %v526, 1
    %v548 = vsel %vm146, %v547, %v546
    %v550 = vsel %vm148, %v548, 0.0
    %551 = vadd.xlane.f32.xlu0 %v550
    %v552 = vpop.xlane.xlu0 %551
    %v553 = vrcp.pop 64.0
    %v554 = vmul.f32 64.0, %v553
    %v555 = vsub.f32 1.0, %v554
    %v556 = vmul.f32 %v553, %v555
    %v557 = vadd.f32 %v553, %v556
    %vm558 = vweird.f32 %v553
    %v559 = vsel %vm558, %v553, %v557
    %v560 = vmul.f32 %v552, %v559
    %v562 = vrot.slane %v560, 1
    %v563 = vrot.slane %v560, 2
    %v564 = vrot.slane %v560, 3
    %v565 = vrot.slane %v560, 4
    %v566 = vrot.slane %v560, 5
    %v567 = vrot.slane %v560, 6
    %v568 = vrot.slane %v560, 7
    %v577 = vsub.f32 %v519, %v560
    %v578 = vsub.f32 %v520, %v562
    %v579 = vsub.f32 %v521, %v563
    %v580 = vsub.f32 %v522, %v564
    %v581 = vsub.f32 %v523, %v565
    %v582 = vsub.f32 %v524, %v566
    %v583 = vsub.f32 %v525, %v567
    %v584 = vsub.f32 %v526, %v568
    %v585 = vmul.f32 %v577, %v577
    %v586 = vmul.f32 %v578, %v578
    %v587 = vmul.f32 %v579, %v579
    %v588 = vmul.f32 %v580, %v580
    %v589 = vmul.f32 %v581, %v581
    %v590 = vmul.f32 %v582, %v582
    %v591 = vmul.f32 %v583, %v583
    %v592 = vmul.f32 %v584, %v584
    %v601 = vrot.slane %v586, 7
    %v602 = vsel %vm128, %v601, %v585
    %v603 = vrot.slane %v587, 6
    %v604 = vsel %vm131, %v603, %v602
    %v605 = vrot.slane %v588, 5
    %v606 = vsel %vm134, %v605, %v604
    %v607 = vrot.slane %v589, 4
    %v608 = vsel %vm137, %v607, %v606
    %v609 = vrot.slane %v590, 3
    %v610 = vsel %vm140, %v609, %v608
    %v611 = vrot.slane %v591, 2
    %v612 = vsel %vm143, %v611, %v610
    %v613 = vrot.slane %v592, 1
    %v614 = vsel %vm146, %v613, %v612
    %v616 = vsel %vm148, %v614, 0.0
    %617 = vadd.xlane.f32.xlu0 %v616
    %v618 = vpop.xlane.xlu0 %617
    %v619 = vmul.f32 %v618, %v559
    %v620 = vadd.f32 %v619, 1e-05
    %v621 = vrsqrt.pop %v620
    %v622 = vmul.f32 %v621, %v620
    %v623 = vmul.f32 %v622, %v621
    %v624 = vmul.f32 0.5, %v623
    %v625 = vsub.f32 1.5, %v624
    %v626 = vmul.f32 %v621, %v625
    %vm627 = vweird.f32 %v620
    %vm628 = vweird.f32 %v621
    %vm629 = vmor %vm627, %vm628
    %v630 = vsel %vm629, %v621, %v626
    %v632 = vrot.slane %v630, 1
    %v633 = vrot.slane %v630, 2
    %v634 = vrot.slane %v630, 3
    %v635 = vrot.slane %v630, 4
    %v636 = vrot.slane %v630, 5
    %v637 = vrot.slane %v630, 6
    %v638 = vrot.slane %v630, 7
    %v647 = vmul.f32 %v577, %v630
    %v648 = vmul.f32 %v578, %v632
    %v649 = vmul.f32 %v579, %v633
    %v650 = vmul.f32 %v580, %v634
    %v651 = vmul.f32 %v581, %v635
    %v652 = vmul.f32 %v582, %v636
    %v653 = vmul.f32 %v583, %v637
    %v654 = vmul.f32 %v584, %v638
    %v655 = vperm.slane %v98, 2
    %v656 = vmul.f32 %v647, %v655
    %v657 = vmul.f32 %v648, %v655
    %v658 = vmul.f32 %v649, %v655
    %v659 = vmul.f32 %v650, %v655
    %v660 = vmul.f32 %v651, %v655
    %v661 = vmul.f32 %v652, %v655
    %v662 = vmul.f32 %v653, %v655
    %v663 = vmul.f32 %v654, %v655
    %v664 = vperm.slane %v98, 3
    %v665 = vadd.f32 %v656, %v664
    %v666 = vadd.f32 %v657, %v664
    %v667 = vadd.f32 %v658, %v664
    %v668 = vadd.f32 %v659, %v664
    %v669 = vadd.f32 %v660, %v664
    %v670 = vadd.f32 %v661, %v664
    %v671 = vadd.f32 %v662, %v664
    %v672 = vadd.f32 %v663, %v664
    %v673 = vld [vmem:[#allocation5] sm:$0xff]
    %v674 = vld [vmem:[#allocation5 + $0x8] sm:$0xff]
    %v675 = vld [vmem:[#allocation5 + $0x10] sm:$0xff]
    %v676 = vld [vmem:[#allocation5 + $0x18] sm:$0xff]
    %v677 = vld [vmem:[#allocation5 + $0x20] sm:$0xff]
    %v678 = vld [vmem:[#allocation5 + $0x28] sm:$0xff]
    %v679 = vld [vmem:[#allocation5 + $0x30] sm:$0xff]
    %v680 = vld [vmem:[#allocation5 + $0x38] sm:$0xff]
    %v681 = vperm.slane %v98, 4
    %v690 = vrot.slane %v666, 7
    %v691 = vsel %vm128, %v690, %v665
    %v692 = vrot.slane %v667, 6
    %v693 = vsel %vm131, %v692, %v691
    %v694 = vrot.slane %v668, 5
    %v695 = vsel %vm134, %v694, %v693
    %v696 = vrot.slane %v669, 4
    %v697 = vsel %vm137, %v696, %v695
    %v698 = vrot.slane %v670, 3
    %v699 = vsel %vm140, %v698, %v697
    %v700 = vrot.slane %v671, 2
    %v701 = vsel %vm143, %v700, %v699
    %v702 = vrot.slane %v672, 1
    %v703 = vsel %vm146, %v702, %v701
    %v704 = vsel %vm148, %v703, 0
    %706 = vmatpush.msra.mxu0 0.0
    %707 = vmatpush.msra.mxu0 0.0
    %708 = vmatpush.msra.mxu0 0.0
    %709 = vmatpush.msra.mxu0 0.0
    %710 = vmatpush.msra.mxu0 0.0
    %711 = vmatpush.msra.mxu0 0.0
    %712 = vmatpush.msra.mxu0 0.0
    %713 = vmatpush.msra.mxu0 0.0
    %714 = vmatpush.msra.mxu0 %v680
    %715 = vmatpush.msra.mxu0 %v679
    %716 = vmatpush.msra.mxu0 %v678
    %717 = vmatpush.msra.mxu0 %v677
    %718 = vmatpush.msra.mxu0 %v676
    %719 = vmatpush.msra.mxu0 %v675
    %720 = vmatpush.msra.mxu0 %v674
    %721 = vmatpush.msra.mxu0 %v673
    %722 = vmatmul.f32.gmra.mxu0 %v704
    %v723 = vpop.f32.mrf.mxu0
    %v724 = vadd.f32 %v681, %v723
    %725 = vdwg.mxu0
    %v726 = vmax.f32 %v724, 0.0
    %v727 = vld [vmem:[%s4] sm:$0xff]
    %v728 = vld [vmem:[%s4 + $0x8] sm:$0xff]
    %v729 = vld [vmem:[%s4 + $0x10] sm:$0xff]
    %v730 = vld [vmem:[%s4 + $0x18] sm:$0xff]
    %v731 = vld [vmem:[%s4 + $0x20] sm:$0xff]
    %v732 = vld [vmem:[%s4 + $0x28] sm:$0xff]
    %v733 = vld [vmem:[%s4 + $0x30] sm:$0xff]
    %v734 = vld [vmem:[%s4 + $0x38] sm:$0xff]
    %v735 = vld [vmem:[%s4 + $0x40] sm:$0xff]
    %v736 = vld [vmem:[%s4 + $0x48] sm:$0xff]
    %v737 = vld [vmem:[%s4 + $0x50] sm:$0xff]
    %v738 = vld [vmem:[%s4 + $0x58] sm:$0xff]
    %v739 = vld [vmem:[%s4 + $0x60] sm:$0xff]
    %v740 = vld [vmem:[%s4 + $0x68] sm:$0xff]
    %v741 = vld [vmem:[%s4 + $0x70] sm:$0xff]
    %v742 = vld [vmem:[%s4 + $0x78] sm:$0xff]
    %v743 = vperm.slane %v98, 5
    %744 = vmatpush.msra.mxu0 %v742
    %745 = vmatpush.msra.mxu0 %v741
    %746 = vmatpush.msra.mxu0 %v740
    %747 = vmatpush.msra.mxu0 %v739
    %748 = vmatpush.msra.mxu0 %v738
    %749 = vmatpush.msra.mxu0 %v737
    %750 = vmatpush.msra.mxu0 %v736
    %751 = vmatpush.msra.mxu0 %v735
    %752 = vmatpush.msra.mxu0 %v734
    %753 = vmatpush.msra.mxu0 %v733
    %754 = vmatpush.msra.mxu0 %v732
    %755 = vmatpush.msra.mxu0 %v731
    %756 = vmatpush.msra.mxu0 %v730
    %757 = vmatpush.msra.mxu0 %v729
    %758 = vmatpush.msra.mxu0 %v728
    %759 = vmatpush.msra.mxu0 %v727
    %760 = vmatmul.f32.gmra.mxu0 %v726
    %v761 = vpop.f32.mrf.mxu0
    %v762 = vadd.f32 %v743, %v761
    %763 = vdwg.mxu0
    %v765 = vrot.slane %v762, 1
    %v766 = vrot.slane %v762, 2
    %v767 = vrot.slane %v762, 3
    %v768 = vrot.slane %v762, 4
    %v769 = vrot.slane %v762, 5
    %v770 = vrot.slane %v762, 6
    %v771 = vrot.slane %v762, 7
    %v780 = vadd.f32 %v665, %v762
    %v781 = vadd.f32 %v666, %v765
    %v782 = vadd.f32 %v667, %v766
    %v783 = vadd.f32 %v668, %v767
    %v784 = vadd.f32 %v669, %v768
    %v785 = vadd.f32 %v670, %v769
    %v786 = vadd.f32 %v671, %v770
    %v787 = vadd.f32 %v672, %v771
    %v796 = vrot.slane %v781, 7
    %v797 = vsel %vm128, %v796, %v780
    %v798 = vrot.slane %v782, 6
    %v799 = vsel %vm131, %v798, %v797
    %v800 = vrot.slane %v783, 5
    %v801 = vsel %vm134, %v800, %v799
    %v802 = vrot.slane %v784, 4
    %v803 = vsel %vm137, %v802, %v801
    %v804 = vrot.slane %v785, 3
    %v805 = vsel %vm140, %v804, %v803
    %v806 = vrot.slane %v786, 2
    %v807 = vsel %vm143, %v806, %v805
    %v808 = vrot.slane %v787, 1
    %v809 = vsel %vm146, %v808, %v807
    %v811 = vsel %vm148, %v809, 0.0
    %812 = vadd.xlane.f32.xlu0 %v811
    %v813 = vpop.xlane.xlu0 %812
    %v814 = vmul.f32 %v813, %v559
    %v816 = vrot.slane %v814, 1
    %v817 = vrot.slane %v814, 2
    %v818 = vrot.slane %v814, 3
    %v819 = vrot.slane %v814, 4
    %v820 = vrot.slane %v814, 5
    %v821 = vrot.slane %v814, 6
    %v822 = vrot.slane %v814, 7
    %v831 = vsub.f32 %v780, %v814
    %v832 = vsub.f32 %v781, %v816
    %v833 = vsub.f32 %v782, %v817
    %v834 = vsub.f32 %v783, %v818
    %v835 = vsub.f32 %v784, %v819
    %v836 = vsub.f32 %v785, %v820
    %v837 = vsub.f32 %v786, %v821
    %v838 = vsub.f32 %v787, %v822
    %v839 = vmul.f32 %v831, %v831
    %v840 = vmul.f32 %v832, %v832
    %v841 = vmul.f32 %v833, %v833
    %v842 = vmul.f32 %v834, %v834
    %v843 = vmul.f32 %v835, %v835
    %v844 = vmul.f32 %v836, %v836
    %v845 = vmul.f32 %v837, %v837
    %v846 = vmul.f32 %v838, %v838
    %v855 = vrot.slane %v840, 7
    %v856 = vsel %vm128, %v855, %v839
    %v857 = vrot.slane %v841, 6
    %v858 = vsel %vm131, %v857, %v856
    %v859 = vrot.slane %v842, 5
    %v860 = vsel %vm134, %v859, %v858
    %v861 = vrot.slane %v843, 4
    %v862 = vsel %vm137, %v861, %v860
    %v863 = vrot.slane %v844, 3
    %v864 = vsel %vm140, %v863, %v862
    %v865 = vrot.slane %v845, 2
    %v866 = vsel %vm143, %v865, %v864
    %v867 = vrot.slane %v846, 1
    %v868 = vsel %vm146, %v867, %v866
    %v870 = vsel %vm148, %v868, 0.0
    %871 = vadd.xlane.f32.xlu0 %v870
    %v872 = vpop.xlane.xlu0 %871
    %v873 = vmul.f32 %v872, %v559
    %v874 = vadd.f32 %v873, 1e-05
    %v875 = vrsqrt.pop %v874
    %v876 = vmul.f32 %v875, %v874
    %v877 = vmul.f32 %v876, %v875
    %v878 = vmul.f32 0.5, %v877
    %v879 = vsub.f32 1.5, %v878
    %v880 = vmul.f32 %v875, %v879
    %vm881 = vweird.f32 %v874
    %vm882 = vweird.f32 %v875
    %vm883 = vmor %vm881, %vm882
    %v884 = vsel %vm883, %v875, %v880
    %v886 = vrot.slane %v884, 1
    %v887 = vrot.slane %v884, 2
    %v888 = vrot.slane %v884, 3
    %v889 = vrot.slane %v884, 4
    %v890 = vrot.slane %v884, 5
    %v891 = vrot.slane %v884, 6
    %v892 = vrot.slane %v884, 7
    %v901 = vmul.f32 %v831, %v884
    %v902 = vmul.f32 %v832, %v886
    %v903 = vmul.f32 %v833, %v887
    %v904 = vmul.f32 %v834, %v888
    %v905 = vmul.f32 %v835, %v889
    %v906 = vmul.f32 %v836, %v890
    %v907 = vmul.f32 %v837, %v891
    %v908 = vmul.f32 %v838, %v892
    %v909 = vperm.slane %v98, 6
    %v910 = vmul.f32 %v901, %v909
    %v911 = vmul.f32 %v902, %v909
    %v912 = vmul.f32 %v903, %v909
    %v913 = vmul.f32 %v904, %v909
    %v914 = vmul.f32 %v905, %v909
    %v915 = vmul.f32 %v906, %v909
    %v916 = vmul.f32 %v907, %v909
    %v917 = vmul.f32 %v908, %v909
    %v918 = vperm.slane %v98, 7
    %v919 = vadd.f32 %v910, %v918
    %v920 = vadd.f32 %v911, %v918
    %v921 = vadd.f32 %v912, %v918
    %v922 = vadd.f32 %v913, %v918
    %v923 = vadd.f32 %v914, %v918
    %v924 = vadd.f32 %v915, %v918
    %v925 = vadd.f32 %v916, %v918
    %v926 = vadd.f32 %v917, %v918
    %v935 = vrot.slane %v920, 7
    %v936 = vsel %vm128, %v935, %v919
    %v937 = vrot.slane %v921, 6
    %v938 = vsel %vm131, %v937, %v936
    %v939 = vrot.slane %v922, 5
    %v940 = vsel %vm134, %v939, %v938
    %v941 = vrot.slane %v923, 4
    %v942 = vsel %vm137, %v941, %v940
    %v943 = vrot.slane %v924, 3
    %v944 = vsel %vm140, %v943, %v942
    %v945 = vrot.slane %v925, 2
    %v946 = vsel %vm143, %v945, %v944
    %v947 = vrot.slane %v926, 1
    %v948 = vsel %vm146, %v947, %v946
    %v950 = vsel %vm148, %v948, 0.0
    %951 = vadd.xlane.f32.xlu0 %v950
    %v952 = vpop.xlane.xlu0 %951
    %v953 = vmul.f32 %v952, %v559
    %v955 = vrot.slane %v953, 1
    %v956 = vrot.slane %v953, 2
    %v957 = vrot.slane %v953, 3
    %v958 = vrot.slane %v953, 4
    %v959 = vrot.slane %v953, 5
    %v960 = vrot.slane %v953, 6
    %v961 = vrot.slane %v953, 7
    %v970 = vsub.f32 %v919, %v953
    %v971 = vsub.f32 %v920, %v955
    %v972 = vsub.f32 %v921, %v956
    %v973 = vsub.f32 %v922, %v957
    %v974 = vsub.f32 %v923, %v958
    %v975 = vsub.f32 %v924, %v959
    %v976 = vsub.f32 %v925, %v960
    %v977 = vsub.f32 %v926, %v961
    %v978 = vmul.f32 %v970, %v970
    %v979 = vmul.f32 %v971, %v971
    %v980 = vmul.f32 %v972, %v972
    %v981 = vmul.f32 %v973, %v973
    %v982 = vmul.f32 %v974, %v974
    %v983 = vmul.f32 %v975, %v975
    %v984 = vmul.f32 %v976, %v976
    %v985 = vmul.f32 %v977, %v977
    %v994 = vrot.slane %v979, 7
    %v995 = vsel %vm128, %v994, %v978
    %v996 = vrot.slane %v980, 6
    %v997 = vsel %vm131, %v996, %v995
    %v998 = vrot.slane %v981, 5
    %v999 = vsel %vm134, %v998, %v997
    %v1000 = vrot.slane %v982, 4
    %v1001 = vsel %vm137, %v1000, %v999
    %v1002 = vrot.slane %v983, 3
    %v1003 = vsel %vm140, %v1002, %v1001
    %v1004 = vrot.slane %v984, 2
    %v1005 = vsel %vm143, %v1004, %v1003
    %v1006 = vrot.slane %v985, 1
    %v1007 = vsel %vm146, %v1006, %v1005
    %v1009 = vsel %vm148, %v1007, 0.0
    %1010 = vadd.xlane.f32.xlu0 %v1009
    %v1011 = vpop.xlane.xlu0 %1010
    %v1012 = vmul.f32 %v1011, %v559
    %v1013 = vadd.f32 %v1012, 1e-05
    %v1014 = vrsqrt.pop %v1013
    %v1015 = vmul.f32 %v1014, %v1013
    %v1016 = vmul.f32 %v1015, %v1014
    %v1017 = vmul.f32 0.5, %v1016
    %v1018 = vsub.f32 1.5, %v1017
    %v1019 = vmul.f32 %v1014, %v1018
    %vm1020 = vweird.f32 %v1013
    %vm1021 = vweird.f32 %v1014
    %vm1022 = vmor %vm1020, %vm1021
    %v1023 = vsel %vm1022, %v1014, %v1019
    %v1025 = vrot.slane %v1023, 1
    %v1026 = vrot.slane %v1023, 2
    %v1027 = vrot.slane %v1023, 3
    %v1028 = vrot.slane %v1023, 4
    %v1029 = vrot.slane %v1023, 5
    %v1030 = vrot.slane %v1023, 6
    %v1031 = vrot.slane %v1023, 7
    %v1040 = vmul.f32 %v970, %v1023
    %v1041 = vmul.f32 %v971, %v1025
    %v1042 = vmul.f32 %v972, %v1026
    %v1043 = vmul.f32 %v973, %v1027
    %v1044 = vmul.f32 %v974, %v1028
    %v1045 = vmul.f32 %v975, %v1029
    %v1046 = vmul.f32 %v976, %v1030
    %v1047 = vmul.f32 %v977, %v1031
    %v1048 = vperm.slane %v100, 0
    %v1049 = vmul.f32 %v1040, %v1048
    %v1050 = vmul.f32 %v1041, %v1048
    %v1051 = vmul.f32 %v1042, %v1048
    %v1052 = vmul.f32 %v1043, %v1048
    %v1053 = vmul.f32 %v1044, %v1048
    %v1054 = vmul.f32 %v1045, %v1048
    %v1055 = vmul.f32 %v1046, %v1048
    %v1056 = vmul.f32 %v1047, %v1048
    %v1057 = vperm.slane %v100, 1
    %v1058 = vadd.f32 %v1049, %v1057
    %v1059 = vadd.f32 %v1050, %v1057
    %v1060 = vadd.f32 %v1051, %v1057
    %v1061 = vadd.f32 %v1052, %v1057
    %v1062 = vadd.f32 %v1053, %v1057
    %v1063 = vadd.f32 %v1054, %v1057
    %v1064 = vadd.f32 %v1055, %v1057
    %v1065 = vadd.f32 %v1056, %v1057
    %v1066 = vld [vmem:[#allocation7] sm:$0xff]
    %v1067 = vld [vmem:[#allocation7 + $0x8] sm:$0xff]
    %v1068 = vld [vmem:[#allocation7 + $0x10] sm:$0xff]
    %v1069 = vld [vmem:[#allocation7 + $0x18] sm:$0xff]
    %v1070 = vld [vmem:[#allocation7 + $0x20] sm:$0xff]
    %v1071 = vld [vmem:[#allocation7 + $0x28] sm:$0xff]
    %v1072 = vld [vmem:[#allocation7 + $0x30] sm:$0xff]
    %v1073 = vld [vmem:[#allocation7 + $0x38] sm:$0xff]
    %v1074 = vperm.slane %v100, 2
    %v1083 = vrot.slane %v1059, 7
    %v1084 = vsel %vm128, %v1083, %v1058
    %v1085 = vrot.slane %v1060, 6
    %v1086 = vsel %vm131, %v1085, %v1084
    %v1087 = vrot.slane %v1061, 5
    %v1088 = vsel %vm134, %v1087, %v1086
    %v1089 = vrot.slane %v1062, 4
    %v1090 = vsel %vm137, %v1089, %v1088
    %v1091 = vrot.slane %v1063, 3
    %v1092 = vsel %vm140, %v1091, %v1090
    %v1093 = vrot.slane %v1064, 2
    %v1094 = vsel %vm143, %v1093, %v1092
    %v1095 = vrot.slane %v1065, 1
    %v1096 = vsel %vm146, %v1095, %v1094
    %v1097 = vsel %vm148, %v1096, 0
    %1099 = vmatpush.msra.mxu0 0.0
    %1100 = vmatpush.msra.mxu0 0.0
    %1101 = vmatpush.msra.mxu0 0.0
    %1102 = vmatpush.msra.mxu0 0.0
    %1103 = vmatpush.msra.mxu0 0.0
    %1104 = vmatpush.msra.mxu0 0.0
    %1105 = vmatpush.msra.mxu0 0.0
    %1106 = vmatpush.msra.mxu0 0.0
    %1107 = vmatpush.msra.mxu0 %v1073
    %1108 = vmatpush.msra.mxu0 %v1072
    %1109 = vmatpush.msra.mxu0 %v1071
    %1110 = vmatpush.msra.mxu0 %v1070
    %1111 = vmatpush.msra.mxu0 %v1069
    %1112 = vmatpush.msra.mxu0 %v1068
    %1113 = vmatpush.msra.mxu0 %v1067
    %1114 = vmatpush.msra.mxu0 %v1066
    %1115 = vmatmul.f32.gmra.mxu0 %v1097
    %v1116 = vpop.f32.mrf.mxu0
    %v1117 = vadd.f32 %v1074, %v1116
    %1118 = vdwg.mxu0
    %1119 = vst [vmem:[#allocation10] sm:$0xff] %v1117
    // Predicated region
    $region46: #{vit_forward.1} parent=1 // pred_check
      _
    $region47: #{vit_forward.1} parent=1 // pred_check_branch
      %1121 = sbr.rel (0) target = $region49
    $region48: #{vit_forward.1} parent=1 // pred_region
      %1123 = vsyncadd [#allocation4], 0
      %s1125 = sshll.u32 [#allocation10], 4
      %s1126 = int_to_ptr.vmem [resolvable:$true] %s1125
      %s1127 = sshll.u32 %s7, 4
      %s1128 = int_to_ptr.hbm [resolvable:$true] %s1127
      %1130 = dma.vmem_to_hbm [thread:$0]  %s1126, 128, %s1128, [#allocation4]
    $region49: #{vit_forward.1} parent=1 // pred_fallthru
      _
    // Predicated region
    $region50: #{vit_forward.1} parent=1 // pred_check
      _
    $region51: #{vit_forward.1} parent=1 // pred_check_branch
      %1132 = sbr.rel (0) target = $region53
    $region52: #{vit_forward.1} parent=1 // pred_region
      %1134 = dma.done [#allocation4], 128
    $region53: #{vit_forward.1} parent=1 // pred_fallthru
      _
    %1135 = vsyncpa [#allocation3], 1
    %1136 = vsyncpa [#allocation6], 1
    %1137 = vsyncpa [#allocation9], 1
    %1138 = vsyncpa [#allocation4], 1

</llo_original>
